<compile_context>
chip_gen: v7x
topology: tpu7x:2x2x1
jax: 0.10.0
libtpu: 0.0.40
codegen_flags: <defaults>
</compile_context>

<pallas_src>
import functools

import jax
import jax.numpy as jnp
from jax.experimental import pallas as pl
from jax.experimental.pallas import tpu as pltpu

_LANE = 128
_SUBLANE_MULT = 32  # keeps full-vreg packing for f32 / bf16 / int8 blocks


@functools.lru_cache(maxsize=1)
def _device_kind() -> str:
    try:
        return jax.devices()[0].device_kind.lower()
    except Exception:  # non-TPU / uninitialized backend: fall back to safe defaults
        return ""


def _is_v5e() -> bool:
    k = _device_kind()
    return ("v5 lite" in k) or ("v5lite" in k) or ("v5e" in k)


def _sharkfin_math(x, native_transcendentals: bool):
    """tanh(exp(x)) * max(-1, x) with f32 accumulation of the product."""
    if native_transcendentals:
        # bf16 exp/tanh on the EUP (v6e/v7x only): ~2x transcendental throughput.
        t = jnp.tanh(jnp.exp(x)).astype(jnp.float32)
    else:
        t = jnp.tanh(jnp.exp(x.astype(jnp.float32)))
    xf = x.astype(jnp.float32)
    return t * jnp.maximum(xf, -1.0)


def _make_kernel(native_transcendentals: bool):
    def kernel(x_ref, o_ref):
        y = _sharkfin_math(x_ref[...], native_transcendentals)
        o_ref[...] = y.astype(o_ref.dtype)

    return kernel


def _sharkfin_xla(x):
    """Plain-XLA fallback for tiny ragged tails (< 128 elements)."""
    return _sharkfin_math(x, False).astype(x.dtype)


def _pick_lanes(n: int) -> int:
    for cand in (1024, 512, 256, 128):
        if n % cand == 0:
            return cand
    raise ValueError("element count must be a multiple of 128 here")


def _sharkfin_pallas_2d(x2d: jax.Array, donate: bool) -> jax.Array:
    rows, lanes = x2d.shape
    dtype = x2d.dtype
    itemsize = jnp.dtype(dtype).itemsize
    n = rows * lanes

    is_v5e = _is_v5e()
    # Bigger blocks are v7x-motivated (amortize per-step overhead at 3.2 TB/s);
    # v5e stays at ~4 MiB where it is already ~85-90% of its HBM roofline.
    target_block_bytes = (4 if is_v5e else 8) * 1024 * 1024
    vmem_limit_bytes = (32 if is_v5e else 48) * 1024 * 1024

    row_bytes = lanes * itemsize
    cap_rows = max(
        _SUBLANE_MULT,
        (target_block_bytes // row_bytes) // _SUBLANE_MULT * _SUBLANE_MULT,
    )

    num_blocks = pl.cdiv(rows, cap_rows)
    # Guarantee the grid can shard across both v7x TensorCores whenever the
    # slab is big enough to split cleanly, and prefer an even grid length.
    if rows >= 2 * _SUBLANE_MULT:
        num_blocks = max(num_blocks, 2)
    if num_blocks > 1 and num_blocks % 2:
        num_blocks += 1

    if num_blocks <= 1:
        block_rows = rows
    else:
        block_rows = pl.cdiv(rows, num_blocks)
        block_rows = min(rows, pl.cdiv(block_rows, _SUBLANE_MULT) * _SUBLANE_MULT)
    grid = (pl.cdiv(rows, block_rows),)  # partial last block handled by Pallas

    native = (dtype == jnp.bfloat16) and not is_v5e

    return pl.pallas_call(
        _make_kernel(native),
        out_shape=jax.ShapeDtypeStruct((rows, lanes), dtype),
        grid=grid,
        in_specs=[pl.BlockSpec((block_rows, lanes), lambda i: (i, 0))],
        out_specs=pl.BlockSpec((block_rows, lanes), lambda i: (i, 0)),
        input_output_aliases=({0: 0} if donate else {}),
        compiler_params=pltpu.CompilerParams(
            dimension_semantics=("parallel",),
            vmem_limit_bytes=vmem_limit_bytes,
        ),
        cost_estimate=pl.CostEstimate(
            flops=2 * n,
            transcendentals=2 * n,
            bytes_accessed=2 * n * itemsize,
        ),
    )(x2d)


def sharkfin(x: jax.Array, *, donate: bool = False) -> jax.Array:
    """Element-wise sharkfin; same shape/dtype as input.

    Set donate=True (and donate x at the jit boundary) to run in place via
    input_output_aliases; otherwise no aliasing is requested so XLA never has
    to insert a defensive copy.
    """
    orig_shape = x.shape
    n = x.size
    if n == 0:
        return x

    xf = x.reshape(-1)
    rem = n % _LANE

    if rem == 0:
        # Common path: pure reshape view to a lane-dense slab, zero extra copies.
        lanes = _pick_lanes(n)
        out2d = _sharkfin_pallas_2d(xf.reshape(n // lanes, lanes), donate)
        return out2d.reshape(orig_shape)

    # Ragged tail: kernel on the 128-aligned prefix, tiny XLA op on the tail.
    n_main = n - rem
    tail_out = _sharkfin_xla(xf[n_main:])
    if n_main == 0:
        return tail_out.reshape(orig_shape)
    lanes = _pick_lanes(n_main)
    head2d = _sharkfin_pallas_2d(xf[:n_main].reshape(n_main // lanes, lanes), donate)
    out_flat = jnp.concatenate([head2d.reshape(-1), tail_out])
    return out_flat.reshape(orig_shape)


def sharkfin_ref(x: jax.Array) -> jax.Array:
    xf = x.astype(jnp.float32)
    return (jnp.tanh(jnp.exp(xf)) * jnp.maximum(xf, -1.0)).astype(x.dtype)


if __name__ == "__main__":
    key = jax.random.PRNGKey(0)

    # Small NCHW input consistent with "(N, *) any extra dims".
    x = jax.random.normal(key, (2, 4, 16, 16), dtype=jnp.float32)
    y = sharkfin(x)
    jax.block_until_ready(y)
    assert y.shape == x.shape and y.dtype == x.dtype
    assert jnp.allclose(y, sharkfin_ref(x), atol=1e-5, rtol=1e-5)

    # Ragged size (not a multiple of 128) to exercise the prefix + tail path.
    x2 = jax.random.normal(jax.random.PRNGKey(1), (3, 7, 9), dtype=jnp.float32)
    y2 = sharkfin(x2)
    jax.block_until_ready(y2)
    assert y2.shape == x2.shape and y2.dtype == x2.dtype
    assert jnp.allclose(y2, sharkfin_ref(x2), atol=1e-5, rtol=1e-5)

    # bf16 input exercises native-EUP transcendentals on v6e/v7x (f32 on v5e).
    x3 = jax.random.normal(jax.random.PRNGKey(2), (4, 8, 32), dtype=jnp.bfloat16)
    y3 = sharkfin(x3)
    jax.block_until_ready(y3)
    assert y3.shape == x3.shape and y3.dtype == x3.dtype
    assert jnp.allclose(
        y3.astype(jnp.float32),
        sharkfin_ref(x3).astype(jnp.float32),
        atol=5e-2,
        rtol=5e-2,
    )

    print("KERNEL_OK")
</pallas_src>

<mosaic_0001>
module attributes {stable_mosaic.version = 11 : i64} {
  func.func @kernel(%arg0: i32, %arg1: memref<2x1024xf32, #tpu.memory_space<vmem>>, %arg2: memref<2x1024xf32, #tpu.memory_space<vmem>>) attributes {dimension_semantics = [#tpu.dimension_semantics<parallel>], iteration_bounds = array<i64: 1>, scalar_prefetch = 0 : i64, scratch_operands = 0 : i64, tpu.core_type = #tpu.core_type<tc>, window_params = [{transform_indices = @transform_0, window_bounds = array<i64: 2, 1024>}, {transform_indices = @transform_1, window_bounds = array<i64: 2, 1024>}]} {
    %c0 = arith.constant 0 : index
    %c0_0 = arith.constant 0 : index
    %0 = vector.load %arg1[%c0, %c0_0] : memref<2x1024xf32, #tpu.memory_space<vmem>>, vector<2x1024xf32>
    %1 = math.exp %0 : vector<2x1024xf32>
    %2 = math.tanh %1 : vector<2x1024xf32>
    %cst = arith.constant -1.000000e+00 : f32
    %3 = vector.broadcast %cst : f32 to vector<2x1024xf32>
    %4 = arith.maximumf %0, %3 : vector<2x1024xf32>
    %5 = arith.mulf %2, %4 : vector<2x1024xf32>
    %c0_1 = arith.constant 0 : index
    %c0_2 = arith.constant 0 : index
    %6 = vector.load %arg2[%c0_1, %c0_2] : memref<2x1024xf32, #tpu.memory_space<vmem>>, vector<2x1024xf32>
    tpu.vector_store %arg2[%c0_1, %c0_2], %5 {strides = array<i32>} : memref<2x1024xf32, #tpu.memory_space<vmem>>, vector<2x1024xf32>,
    return
  }
  func.func @transform_0(%arg0: i32) -> (i32, i32) {
    %c0_i32 = arith.constant 0 : i32
    %c0_i32_0 = arith.constant 0 : i32
    return %arg0, %c0_i32 : i32, i32
  }
  func.func @transform_1(%arg0: i32) -> (i32, i32) {
    %c0_i32 = arith.constant 0 : i32
    %c0_i32_0 = arith.constant 0 : i32
    return %arg0, %c0_i32 : i32, i32
  }
}

</mosaic_0001>

<llo_original>
// kernel: tpu_custom_call.1
$region0: #{tpu_custom_call.1}
  #allocation0 [shape = 'u32[]', space=smem, size = 0x4, offset = 0x4, fixed_abs, tag = 'smem constant byte address 0x4 - core index']
  #allocation1 [shape = 'u32[144,128]{1,0:T(1,128)}', space=vmem, size = 0x12000, scoped, tag = 'internal scratch']
  %s0 = inlined_call_operand.hbm [shape: f32[2,1024], index: 0, kind: input, shape index: {}]
  %s1 = inlined_call_operand.hbm [shape: f32[2,1024], index: 1, kind: output, shape index: {}]
  %s2 = sld [smem:[#allocation0]]
  $region18: #{tpu_custom_call.1} parent=0
    _
  %s4 = ssub.s32 1, %s2
  %s5 = scalar_select 0, %s4, %s2
  $region1: #{tpu_custom_call.1} parent=0
    #allocation2 [shape = 'u8[8192]{0}', space=vmem, size = 0x2000, scoped, tag = 'input window, operand 0, single buffered']
    #allocation3 [shape = 's32[1]{0}', space=sflag, size = 0x4, scoped, tag = 'scoped memory for tpu_custom_call.1']
    #allocation4 [shape = 's32[1]{0}', space=sflag, size = 0x4, scoped, tag = 'scoped memory for tpu_custom_call.1']
    #allocation5 [shape = 'u8[8192]{0}', space=vmem, size = 0x2000, scoped, tag = 'output window, operand 0, single buffered']
    %6 = vsyncpa [#allocation3], 0
    %7 = vsyncpa [#allocation4], 0
    // Predicated region
    $region2: #{tpu_custom_call.1} parent=1 // pred_check
      _
    $region3: #{tpu_custom_call.1} parent=1 // pred_check_branch
      %9 = sbr.rel (0) target = $region5
    $region4: #{tpu_custom_call.1} parent=1 // pred_region
      %s11 = ssub.s32 256, 256
      %12 = vsyncadd [#allocation3], %s11
      %s14 = sshll.u32 [#allocation2], 4
      %s15 = int_to_ptr.vmem [resolvable:$true] %s14
      %17 = dma.hbm_to_vmem [thread:$0]  %s0, 256, %s15, [#allocation3]
    $region5: #{tpu_custom_call.1} parent=1 // pred_fallthru
      _
    // Predicated region
    $region6: #{tpu_custom_call.1} parent=1 // pred_check
      _
    $region7: #{tpu_custom_call.1} parent=1 // pred_check_branch
      %19 = sbr.rel (0) target = $region9
    $region8: #{tpu_custom_call.1} parent=1 // pred_region
      %20 = dma.done [#allocation3], 256
    $region9: #{tpu_custom_call.1} parent=1 // pred_fallthru
      _
    %v21 = vld [vmem:[#allocation2] sm:$0xff]
    %v22 = vld [vmem:[#allocation2 + $0x8] sm:$0xff]
    %v23 = vmul.f32 %v21, 1.442695
    %v24 = vpow.pop %v23
    %v25 = vmul.f32 %v22, 1.442695
    %v26 = vpow.pop %v25
    %v27 = vtanh.pop %v24
    %v28 = vtanh.pop %v26
    %v29 = vmax.f32 %v21, -1.0
    %v30 = vmax.f32 %v22, -1.0
    %v31 = vmul.f32 %v27, %v29
    %v32 = vmul.f32 %v28, %v30
    %33 = vst [vmem:[#allocation5] sm:$0xff] %v31
    %34 = vst [vmem:[#allocation5 + $0x8] sm:$0xff] %v32
    // Predicated region
    $region10: #{tpu_custom_call.1} parent=1 // pred_check
      _
    $region11: #{tpu_custom_call.1} parent=1 // pred_check_branch
      %36 = sbr.rel (0) target = $region13
    $region12: #{tpu_custom_call.1} parent=1 // pred_region
      %s38 = ssub.s32 256, 256
      %39 = vsyncadd [#allocation4], %s38
      %s41 = sshll.u32 [#allocation5], 4
      %s42 = int_to_ptr.vmem [resolvable:$true] %s41
      %44 = dma.vmem_to_hbm [thread:$0]  %s42, 256, %s1, [#allocation4]
    $region13: #{tpu_custom_call.1} parent=1 // pred_fallthru
      _
    // Predicated region
    $region14: #{tpu_custom_call.1} parent=1 // pred_check
      _
    $region15: #{tpu_custom_call.1} parent=1 // pred_check_branch
      %46 = sbr.rel (0) target = $region17
    $region16: #{tpu_custom_call.1} parent=1 // pred_region
      %47 = dma.done [#allocation4], 256
    $region17: #{tpu_custom_call.1} parent=1 // pred_fallthru
      _
    %48 = vsyncpa [#allocation3], 1
    %49 = vsyncpa [#allocation4], 1

</llo_original>
